<compile_context>
chip_gen: v6e
topology: v6e:2x2x1
jax: 0.10.0
libtpu: 0.0.40
codegen_flags: <defaults>
</compile_context>

<pallas_src>
import functools
from typing import NamedTuple

import jax
import jax.numpy as jnp
from jax.experimental import pallas as pl
from jax.experimental.pallas import tpu as pltpu


# --------------------------------------------------------------------------- #
# Kernel A (shared body, one-shot): out = relu(x @ w + shift)
#   A1: im2col conv   (B*P, K)  @ (K, C)    + folded bn0/bn1/conv-bias shift
#   A2: fc            (B, P*C)  @ (P*C, D)  + folded bn2/fc-bias shift
# --------------------------------------------------------------------------- #
def _matmul_shift_relu_kernel(x_ref, w_ref, shift_ref, o_ref):
    o_ref[...] = jnp.maximum(
        jnp.dot(x_ref[...], w_ref[...], preferred_element_type=jnp.float32)
        + shift_ref[...], 0.0)


def _matmul_shift_relu(x, w, shift):
    m, k = x.shape
    _, n = w.shape
    return pl.pallas_call(
        _matmul_shift_relu_kernel,
        out_shape=jax.ShapeDtypeStruct((m, n), jnp.float32),
        grid=(1,),
        in_specs=[
            pl.BlockSpec((m, k), lambda i: (0, 0)),
            pl.BlockSpec((k, n), lambda i: (0, 0)),
            pl.BlockSpec((1, n), lambda i: (0, 0)),
        ],
        out_specs=pl.BlockSpec((m, n), lambda i: (0, 0)),
        compiler_params=pltpu.CompilerParams(
            dimension_semantics=("arbitrary",)),
    )(x, w, shift)


# --------------------------------------------------------------------------- #
# Kernel B: streaming entity scoring.  Pure tiled matmul + bias, no state.
#   out[b, n] = sum_d y[b, d] * entT[d, n] + bias[n]
# y / entT may be bf16 (HBM-streaming); accumulation is always f32 on the MXU.
# --------------------------------------------------------------------------- #
def _conve_score_kernel(y_ref, ent_ref, bias_ref, out_ref):
    out_ref[...] = (
        jnp.dot(y_ref[...], ent_ref[...], preferred_element_type=jnp.float32)
        + bias_ref[...])


# --------------------------------------------------------------------------- #
# One-time entity-table preparation (hoisted out of the per-query forward).
# --------------------------------------------------------------------------- #
class EntityTable(NamedTuple):
    ent_t: jax.Array      # (D, Ne_pad) in table_dtype (bf16 by default)
    bias: jax.Array       # (1, Ne_pad) float32
    ent_tile: int         # lane-dense tile width
    num_entities: int     # original Ne (padding sliced off after scoring)


def _round_up(x, m):
    return ((x + m - 1) // m) * m


_ENT_TILE_BUDGET_BYTES = 6 * 1024 * 1024   # per entity-tile buffer (x2 double-buffered)


def prepare_entity_table(all_ent_emb, ent_bias, *, ent_tile=None,
                         table_dtype=jnp.bfloat16):
    """Transpose/pad/cast the entity table once; reuse across forward calls."""
    Ne, D = all_ent_emb.shape
    if ent_tile is None:
        bpe = jnp.dtype(table_dtype).itemsize
        ent_tile = _ENT_TILE_BUDGET_BYTES // (D * bpe)
        ent_tile = max(512, min(65536, ent_tile))
        ent_tile = (ent_tile // 512) * 512
    # Lane-dense tile; keep >= 2 tiles when the table is big enough so the v7x
    # megacore can shard the "parallel" entity axis across both TensorCores.
    ent_tile = min(ent_tile, _round_up(Ne, 128))
    if Ne >= 1024:
        ent_tile = min(ent_tile, _round_up((Ne + 1) // 2, 512))
    n_tiles = (Ne + ent_tile - 1) // ent_tile
    ne_pad = n_tiles * ent_tile

    ent_t = jnp.transpose(all_ent_emb).astype(table_dtype)         # (D, Ne)
    bias_row = ent_bias.astype(jnp.float32).reshape(1, Ne)
    if ne_pad != Ne:
        ent_t = jnp.pad(ent_t, ((0, 0), (0, ne_pad - Ne)))
        bias_row = jnp.pad(bias_row, ((0, 0), (0, ne_pad - Ne)))
    return EntityTable(ent_t, bias_row, ent_tile, Ne)


# --------------------------------------------------------------------------- #
# ConvE.forward (eval mode) -> scores (B, Ne)
# --------------------------------------------------------------------------- #
def conve_forward(e1_emb, rel_emb, ent_table, conv_w, conv_b, fc_w, fc_b,
                  bn0, bn1, bn2, *, emb_dim1, emb_dim2, filter_size, eps=1e-5):
    f32 = jnp.float32
    B = e1_emb.shape[0]
    d1, d2, fs = emb_dim1, emb_dim2, filter_size
    H, W = 2 * d1, d2
    Ho, Wo = H - fs + 1, W - fs + 1
    P, K = Ho * Wo, fs * fs
    C = conv_w.shape[0]
    D_out = fc_w.shape[0]

    g0, beta0, m0, v0 = [a.astype(f32) for a in bn0]
    g1, beta1, m1, v1 = [a.astype(f32) for a in bn1]
    g2, beta2, m2, v2 = [a.astype(f32) for a in bn2]

    # Eval-mode BatchNorm -> affine (scale, shift).
    s0 = g0[0] / jnp.sqrt(v0[0] + eps)          # scalar (BatchNorm2d(1))
    t0 = beta0[0] - m0[0] * s0
    s1 = g1 / jnp.sqrt(v1 + eps)                # (C,)
    t1 = beta1 - m1 * s1
    s2 = g2 / jnp.sqrt(v2 + eps)                # (D_out,)
    t2 = beta2 - m2 * s2

    # Fold bn0, conv bias, and bn1 into the im2col'd conv weight.
    wc = conv_w.reshape(C, K).T.astype(f32)                        # (K, C)
    wc_eff = wc * (s0 * s1)[None, :]
    c_shift = (s1 * (t0 * wc.sum(axis=0) + conv_b.astype(f32)) + t1).reshape(1, C)

    # fc weight permuted so its rows match the (p*C + c) hidden flatten used
    # below (PyTorch flattens (c, ho, wo) => column index c*P + p); bn2 folded.
    fc_pc = (fc_w.astype(f32).reshape(D_out, C, P).transpose(2, 1, 0)
             .reshape(P * C, D_out)) * s2[None, :]                 # (P*C, D)
    f_shift = (fc_b.astype(f32) * s2 + t2).reshape(1, D_out)

    # im2col (layout plumbing, done with XLA in the wrapper):
    #   patches[b, p, k] = stacked[b, ho+di, wo+dj],  p = ho*Wo + wo, k = di*fs + dj
    stacked = jnp.concatenate(
        [e1_emb.reshape(B, d1, d2), rel_emb.reshape(B, d1, d2)],
        axis=1).astype(f32)                                        # (B, H, W)
    cols = [stacked[:, di:di + Ho, dj:dj + Wo]
            for di in range(fs) for dj in range(fs)]
    patches2d = jnp.stack(cols, axis=-1).reshape(B * P, K)         # (B*P, K)

    # ---------------- Kernel A: one-shot feature computation (2 matmuls) ---- #
    h = _matmul_shift_relu(patches2d, wc_eff, c_shift)             # (B*P, C)
    h2d = h.reshape(B, P * C)                                      # layout plumbing
    y = _matmul_shift_relu(h2d, fc_pc, f_shift)                    # (B, D)

    # ---------------- Kernel B: streaming entity scoring -------------------- #
    ent_t, bias_row, tile, Ne = ent_table
    ne_pad = ent_t.shape[1]
    n_tiles = ne_pad // tile
    y_stream = y.astype(ent_t.dtype)     # bf16 stream, f32 MXU accumulation

    scores = pl.pallas_call(
        _conve_score_kernel,
        out_shape=jax.ShapeDtypeStruct((B, ne_pad), f32),
        grid=(n_tiles,),
        in_specs=[
            pl.BlockSpec((B, D_out), lambda j: (0, 0)),            # query y
            pl.BlockSpec((D_out, tile), lambda j: (0, j)),         # entity tile
            pl.BlockSpec((1, tile), lambda j: (0, j)),             # per-entity bias
        ],
        out_specs=pl.BlockSpec((B, tile), lambda j: (0, j)),
        compiler_params=pltpu.CompilerParams(
            dimension_semantics=("parallel",),
            vmem_limit_bytes=32 * 1024 * 1024),
    )(y_stream, ent_t, bias_row)

    return scores[:, :Ne]


# --------------------------------------------------------------------------- #
# Pure-JAX mirror of the PyTorch ConvE forward (eval mode) for verification.
# --------------------------------------------------------------------------- #
def conve_reference(e1_emb, rel_emb, all_ent_emb, ent_bias,
                    conv_w, conv_b, fc_w, fc_b, bn0, bn1, bn2,
                    *, emb_dim1, emb_dim2, filter_size, eps=1e-5):
    B = e1_emb.shape[0]
    g0, b0, m0, v0 = bn0
    g1, b1, m1, v1 = bn1
    g2, b2, m2, v2 = bn2

    e1 = e1_emb.reshape(B, 1, emb_dim1, emb_dim2)
    rel = rel_emb.reshape(B, 1, emb_dim1, emb_dim2)
    x = jnp.concatenate([e1, rel], axis=2)
    x = (x - m0.reshape(1, 1, 1, 1)) / jnp.sqrt(v0.reshape(1, 1, 1, 1) + eps) \
        * g0.reshape(1, 1, 1, 1) + b0.reshape(1, 1, 1, 1)
    x = jax.lax.conv_general_dilated(
        x, conv_w, window_strides=(1, 1), padding='VALID',
        dimension_numbers=('NCHW', 'OIHW', 'NCHW'))
    x = x + conv_b.reshape(1, -1, 1, 1)
    x = (x - m1.reshape(1, -1, 1, 1)) / jnp.sqrt(v1.reshape(1, -1, 1, 1) + eps) \
        * g1.reshape(1, -1, 1, 1) + b1.reshape(1, -1, 1, 1)
    x = jnp.maximum(x, 0.0)
    x = x.reshape(B, -1)
    x = x @ fc_w.T + fc_b
    x = (x - m2) / jnp.sqrt(v2 + eps) * g2 + b2
    x = jnp.maximum(x, 0.0)
    return x @ all_ent_emb.T + ent_bias


if __name__ == "__main__":
    B = 2
    emb_dim1, emb_dim2 = 4, 8
    D = emb_dim1 * emb_dim2          # ent_embed_dim = 32 (project_on/graph_on off)
    filter_size = 3
    channels = 8
    Ne = 3000                        # not a multiple of the tile -> exercises padding
    Ho = 2 * emb_dim1 - filter_size + 1
    Wo = emb_dim2 - filter_size + 1
    conv_hid = channels * Ho * Wo

    ks = jax.random.split(jax.random.PRNGKey(0), 20)
    e1_emb = jax.random.normal(ks[0], (B, D), jnp.float32)
    rel_emb = jax.random.normal(ks[1], (B, D), jnp.float32)
    all_ent_emb = jax.random.normal(ks[2], (Ne, D), jnp.float32)
    ent_bias = 0.1 * jax.random.normal(ks[3], (Ne,), jnp.float32)
    conv_w = 0.3 * jax.random.normal(
        ks[4], (channels, 1, filter_size, filter_size), jnp.float32)
    conv_b = 0.1 * jax.random.normal(ks[5], (channels,), jnp.float32)
    fc_w = 0.1 * jax.random.normal(ks[6], (D, conv_hid), jnp.float32)
    fc_b = 0.1 * jax.random.normal(ks[7], (D,), jnp.float32)

    def bn_params(kg, kb, km, kv, n):
        gamma = 1.0 + 0.1 * jax.random.normal(kg, (n,), jnp.float32)
        beta = 0.1 * jax.random.normal(kb, (n,), jnp.float32)
        mean = 0.1 * jax.random.normal(km, (n,), jnp.float32)
        var = jax.random.uniform(kv, (n,), jnp.float32, 0.5, 1.5)
        return gamma, beta, mean, var

    bn0 = bn_params(ks[8], ks[9], ks[10], ks[11], 1)
    bn1 = bn_params(ks[12], ks[13], ks[14], ks[15], channels)
    bn2 = bn_params(ks[16], ks[17], ks[18], ks[19], D)

    # One-time entity-table prep (hoisted out of the forward and reusable).
    table_bf16 = prepare_entity_table(all_ent_emb, ent_bias)                 # perf path
    table_f32 = prepare_entity_table(all_ent_emb, ent_bias,
                                     table_dtype=jnp.float32)                # exact path

    fwd = functools.partial(conve_forward,
                            conv_w=conv_w, conv_b=conv_b, fc_w=fc_w, fc_b=fc_b,
                            bn0=bn0, bn1=bn1, bn2=bn2,
                            emb_dim1=emb_dim1, emb_dim2=emb_dim2,
                            filter_size=filter_size)

    out_f32 = jax.block_until_ready(fwd(e1_emb, rel_emb, table_f32))
    out_bf16 = jax.block_until_ready(fwd(e1_emb, rel_emb, table_bf16))

    ref = conve_reference(e1_emb, rel_emb, all_ent_emb, ent_bias,
                          conv_w, conv_b, fc_w, fc_b, bn0, bn1, bn2,
                          emb_dim1=emb_dim1, emb_dim2=emb_dim2,
                          filter_size=filter_size)

    assert out_f32.shape == (B, Ne) and out_bf16.shape == (B, Ne)
    # f32 table path: tight check of the folded-BN / im2col math.
    assert jnp.allclose(out_f32, ref, rtol=1e-3, atol=1e-2), \
        "f32 path mismatch vs pure-JAX reference"
    # bf16-streaming path: f32 accumulation, tolerance relaxed for bf16 inputs.
    assert jnp.allclose(out_bf16, ref, rtol=2e-2, atol=2.5e-1), \
        "bf16 path mismatch vs pure-JAX reference"

    print("KERNEL_OK")
</pallas_src>

<mosaic_0001>
module attributes {stable_mosaic.version = 11 : i64} {
  func.func @_matmul_shift_relu_kernel(%arg0: i32, %arg1: memref<72x9xf32, #tpu.memory_space<vmem>>, %arg2: memref<9x8xf32, #tpu.memory_space<vmem>>, %arg3: memref<1x8xf32, #tpu.memory_space<vmem>>, %arg4: memref<72x8xf32, #tpu.memory_space<vmem>>) attributes {dimension_semantics = [#tpu.dimension_semantics<arbitrary>], iteration_bounds = array<i64: 1>, scalar_prefetch = 0 : i64, scratch_operands = 0 : i64, tpu.core_type = #tpu.core_type<tc>, window_params = [{pipeline_mode = #tpu.pipeline_mode<synchronous>, transform_indices = @transform_0, window_bounds = array<i64: 72, 9>}, {pipeline_mode = #tpu.pipeline_mode<synchronous>, transform_indices = @transform_1, window_bounds = array<i64: 9, 8>}, {pipeline_mode = #tpu.pipeline_mode<synchronous>, transform_indices = @transform_2, window_bounds = array<i64: 1, 8>}, {pipeline_mode = #tpu.pipeline_mode<synchronous>, transform_indices = @transform_3, window_bounds = array<i64: 72, 8>}]} {
    %c0 = arith.constant 0 : index
    %c0_0 = arith.constant 0 : index
    %0 = vector.load %arg1[%c0, %c0_0] : memref<72x9xf32, #tpu.memory_space<vmem>>, vector<72x9xf32>
    %c0_1 = arith.constant 0 : index
    %c0_2 = arith.constant 0 : index
    %1 = vector.load %arg2[%c0_1, %c0_2] : memref<9x8xf32, #tpu.memory_space<vmem>>, vector<9x8xf32>
    %cst = arith.constant dense<0.000000e+00> : vector<72x8xf32>
    %2 = tpu.matmul %0, %1, %cst {dimension_numbers = #tpu.dot_dimension_numbers<[1], [0], [0], [1], [0, 0, 1, 1], [], []>} : vector<72x9xf32>, vector<9x8xf32>, vector<72x8xf32> -> vector<72x8xf32>
    %c0_3 = arith.constant 0 : index
    %c0_4 = arith.constant 0 : index
    %3 = vector.load %arg3[%c0_3, %c0_4] : memref<1x8xf32, #tpu.memory_space<vmem>>, vector<1x8xf32>
    %4 = vector.broadcast %3 : vector<1x8xf32> to vector<72x8xf32>
    %5 = arith.addf %2, %4 : vector<72x8xf32>
    %cst_5 = arith.constant 0.000000e+00 : f32
    %6 = vector.broadcast %cst_5 : f32 to vector<72x8xf32>
    %7 = arith.maximumf %5, %6 : vector<72x8xf32>
    %c0_6 = arith.constant 0 : index
    %c0_7 = arith.constant 0 : index
    %8 = vector.load %arg4[%c0_6, %c0_7] : memref<72x8xf32, #tpu.memory_space<vmem>>, vector<72x8xf32>
    tpu.vector_store %arg4[%c0_6, %c0_7], %7 {strides = array<i32>} : memref<72x8xf32, #tpu.memory_space<vmem>>, vector<72x8xf32>,
    return
  }
  func.func @transform_0(%arg0: i32) -> (i32, i32) {
    %c0_i32 = arith.constant 0 : i32
    %c0_i32_0 = arith.constant 0 : i32
    %c0_i32_1 = arith.constant 0 : i32
    return %c0_i32, %c0_i32_0 : i32, i32
  }
  func.func @transform_1(%arg0: i32) -> (i32, i32) {
    %c0_i32 = arith.constant 0 : i32
    %c0_i32_0 = arith.constant 0 : i32
    %c0_i32_1 = arith.constant 0 : i32
    return %c0_i32, %c0_i32_0 : i32, i32
  }
  func.func @transform_2(%arg0: i32) -> (i32, i32) {
    %c0_i32 = arith.constant 0 : i32
    %c0_i32_0 = arith.constant 0 : i32
    %c0_i32_1 = arith.constant 0 : i32
    return %c0_i32, %c0_i32_0 : i32, i32
  }
  func.func @transform_3(%arg0: i32) -> (i32, i32) {
    %c0_i32 = arith.constant 0 : i32
    %c0_i32_0 = arith.constant 0 : i32
    %c0_i32_1 = arith.constant 0 : i32
    return %c0_i32, %c0_i32_0 : i32, i32
  }
}

</mosaic_0001>

<llo_original>
// kernel: tpu_custom_call.1
$region0: #{tpu_custom_call.1}
  #allocation0 [shape = 'u32[]', space=smem, size = 0x4, offset = 0x4, fixed_abs, tag = 'smem constant byte address 0x4 - core index']
  #allocation1 [shape = 'u32[144,128]{1,0:T(1,128)}', space=vmem, size = 0x12000, scoped, tag = 'internal scratch']
  %s0 = inlined_call_operand.vmem [shape: f32[72,9], index: 0, kind: input, shape index: {}]
  %s1 = inlined_call_operand.vmem [shape: f32[9,8], index: 1, kind: input, shape index: {}]
  %s2 = inlined_call_operand.vmem [shape: f32[1,8], index: 2, kind: input, shape index: {}]
  %s3 = inlined_call_operand.vmem [shape: f32[72,8], index: 3, kind: output, shape index: {}]
  %s4 = sld [smem:[#allocation0]]
  $region22: #{tpu_custom_call.1} parent=0
    _
  %s6 = ssub.s32 1, %s4
  %s7 = scalar_select 0, %s6, %s4
  // Predicated region
  $region2: #{tpu_custom_call.1} parent=0 // pred_check
    _
  $region3: #{tpu_custom_call.1} parent=0 // pred_check_branch
    %9 = sbr.rel (0) target = $region5
  $region4: #{tpu_custom_call.1} parent=0 // pred_region
    _
  $region5: #{tpu_custom_call.1} parent=0 // pred_fallthru
    _
  // Predicated region
  $region6: #{tpu_custom_call.1} parent=0 // pred_check
    _
  $region7: #{tpu_custom_call.1} parent=0 // pred_check_branch
    %11 = sbr.rel (0) target = $region9
  $region8: #{tpu_custom_call.1} parent=0 // pred_region
    _
  $region9: #{tpu_custom_call.1} parent=0 // pred_fallthru
    _
  // Predicated region
  $region10: #{tpu_custom_call.1} parent=0 // pred_check
    _
  $region11: #{tpu_custom_call.1} parent=0 // pred_check_branch
    %13 = sbr.rel (0) target = $region13
  $region12: #{tpu_custom_call.1} parent=0 // pred_region
    _
  $region13: #{tpu_custom_call.1} parent=0 // pred_fallthru
    _
  %v14 = vld [vmem:[%s0] sm:$0xff]
  %v15 = vld [vmem:[%s0 + $0x8] sm:$0xff]
  %v16 = vld [vmem:[%s0 + $0x10] sm:$0xff]
  %v17 = vld [vmem:[%s0 + $0x18] sm:$0xff]
  %v18 = vld [vmem:[%s0 + $0x20] sm:$0xff]
  %v19 = vld [vmem:[%s0 + $0x28] sm:$0xff]
  %v20 = vld [vmem:[%s0 + $0x30] sm:$0xff]
  %v21 = vld [vmem:[%s0 + $0x38] sm:$0xff]
  %v22 = vld [vmem:[%s0 + $0x40] sm:$0xff]
  %v23 = vld [vmem:[%s1] sm:$0xff]
  %v24 = vld [vmem:[%s1 + $0x8] sm:$0x1]
  %v25 = vld [vmem:[%s2] sm:$0x1]
  %v27 = vlaneseq
  %v28 = vshrl.u32 %v27, 7
  %v29 = vsub.s32 0, %v28
  %v30 = vrot.slane %v25, %v29
  %vm32 = vcmask 72704
  %v34 = vsel %vm32, %v14, 0
  %v37 = vsel %vm32, %v15, 0
  %v40 = vsel %vm32, %v16, 0
  %v43 = vsel %vm32, %v17, 0
  %v46 = vsel %vm32, %v18, 0
  %v49 = vsel %vm32, %v19, 0
  %v52 = vsel %vm32, %v20, 0
  %v55 = vsel %vm32, %v21, 0
  %v58 = vsel %vm32, %v22, 0
  %vm60 = vcmask 1040384
  %v62 = vsel %vm60, %v24, 0
  %64 = vmatprep.subr.mxu0 0.0
  %65 = vmatpush1.msra.mxu0 0.0
  %66 = vmatprep.subr.mxu0 0.0
  %67 = vmatpush1.msra.mxu0 0.0
  %68 = vmatprep.subr.mxu0 0.0
  %69 = vmatpush1.msra.mxu0 0.0
  %70 = vmatprep.subr.mxu0 0.0
  %71 = vmatpush1.msra.mxu0 0.0
  %72 = vmatprep.subr.mxu0 0.0
  %73 = vmatpush1.msra.mxu0 0.0
  %74 = vmatprep.subr.mxu0 0.0
  %75 = vmatpush1.msra.mxu0 0.0
  %76 = vmatprep.subr.mxu0 0.0
  %77 = vmatpush1.msra.mxu0 0.0
  %78 = vmatprep.subr.mxu0 0.0
  %79 = vmatpush1.msra.mxu0 0.0
  %80 = vmatprep.subr.mxu0 0.0
  %81 = vmatpush1.msra.mxu0 0.0
  %82 = vmatprep.subr.mxu0 0.0
  %83 = vmatpush1.msra.mxu0 0.0
  %84 = vmatprep.subr.mxu0 0.0
  %85 = vmatpush1.msra.mxu0 0.0
  %86 = vmatprep.subr.mxu0 0.0
  %87 = vmatpush1.msra.mxu0 0.0
  %88 = vmatprep.subr.mxu0 0.0
  %89 = vmatpush1.msra.mxu0 0.0
  %90 = vmatprep.subr.mxu0 0.0
  %91 = vmatpush1.msra.mxu0 0.0
  %92 = vmatprep.subr.mxu0 0.0
  %93 = vmatpush1.msra.mxu0 %v62
  %94 = vmatprep.subr.mxu0 0.0
  %95 = vmatpush1.msra.mxu0 %v23
  %96 = vmatprep.subr.mxu0 0.0
  %97 = vmatpush2.msra.mxu0 0.0
  %98 = vmatprep.subr.mxu0 0.0
  %99 = vmatpush2.msra.mxu0 0.0
  %100 = vmatprep.subr.mxu0 0.0
  %101 = vmatpush2.msra.mxu0 0.0
  %102 = vmatprep.subr.mxu0 0.0
  %103 = vmatpush2.msra.mxu0 0.0
  %104 = vmatprep.subr.mxu0 0.0
  %105 = vmatpush2.msra.mxu0 0.0
  %106 = vmatprep.subr.mxu0 0.0
  %107 = vmatpush2.msra.mxu0 0.0
  %108 = vmatprep.subr.mxu0 0.0
  %109 = vmatpush2.msra.mxu0 0.0
  %110 = vmatprep.subr.mxu0 0.0
  %111 = vmatpush2.msra.mxu0 0.0
  %112 = vmatprep.subr.mxu0 0.0
  %113 = vmatpush2.msra.mxu0 0.0
  %114 = vmatprep.subr.mxu0 0.0
  %115 = vmatpush2.msra.mxu0 0.0
  %116 = vmatprep.subr.mxu0 0.0
  %117 = vmatpush2.msra.mxu0 0.0
  %118 = vmatprep.subr.mxu0 0.0
  %119 = vmatpush2.msra.mxu0 0.0
  %120 = vmatprep.subr.mxu0 0.0
  %121 = vmatpush2.msra.mxu0 0.0
  %122 = vmatprep.subr.mxu0 0.0
  %123 = vmatpush2.msra.mxu0 0.0
  %124 = vmatprep.subr.mxu0 0.0
  %125 = vmatpush2.msra.mxu0 0.0
  %126 = vmatprep.subr.mxu0 0.0
  %127 = vmatpush2.msra.mxu0 0.0
  %128 = vmatprep.mubr.f32.mxu0 0.0
  %129 = vmatmul.mubr.f32.gmra.mxu0 %v34
  %v130 = vpop.f32.mrf.mxu0
  %v131 = vadd.f32 %v30, %v130
  %v132 = vpop.f32.mrf.mxu0
  %133 = vmatprep.mubr.f32.mxu0 0.0
  %134 = vmatmul.mubr.f32.gmra.mxu0 %v37
  %v135 = vpop.f32.mrf.mxu0
  %v136 = vadd.f32 %v30, %v135
  %v137 = vpop.f32.mrf.mxu0
  %138 = vmatprep.mubr.f32.mxu0 0.0
  %139 = vmatmul.mubr.f32.gmra.mxu0 %v40
  %v140 = vpop.f32.mrf.mxu0
  %v141 = vadd.f32 %v30, %v140
  %v142 = vpop.f32.mrf.mxu0
  %143 = vmatprep.mubr.f32.mxu0 0.0
  %144 = vmatmul.mubr.f32.gmra.mxu0 %v43
  %v145 = vpop.f32.mrf.mxu0
  %v146 = vadd.f32 %v30, %v145
  %v147 = vpop.f32.mrf.mxu0
  %148 = vmatprep.mubr.f32.mxu0 0.0
  %149 = vmatmul.mubr.f32.gmra.mxu0 %v46
  %v150 = vpop.f32.mrf.mxu0
  %v151 = vadd.f32 %v30, %v150
  %v152 = vpop.f32.mrf.mxu0
  %153 = vmatprep.mubr.f32.mxu0 0.0
  %154 = vmatmul.mubr.f32.gmra.mxu0 %v49
  %v155 = vpop.f32.mrf.mxu0
  %v156 = vadd.f32 %v30, %v155
  %v157 = vpop.f32.mrf.mxu0
  %158 = vmatprep.mubr.f32.mxu0 0.0
  %159 = vmatmul.mubr.f32.gmra.mxu0 %v52
  %v160 = vpop.f32.mrf.mxu0
  %v161 = vadd.f32 %v30, %v160
  %v162 = vpop.f32.mrf.mxu0
  %163 = vmatprep.mubr.f32.mxu0 0.0
  %164 = vmatmul.mubr.f32.gmra.mxu0 %v55
  %v165 = vpop.f32.mrf.mxu0
  %v166 = vadd.f32 %v30, %v165
  %v167 = vpop.f32.mrf.mxu0
  %168 = vmatprep.mubr.f32.mxu0 0.0
  %169 = vmatmul.mubr.f32.gmra.mxu0 %v58
  %v170 = vpop.f32.mrf.mxu0
  %v171 = vadd.f32 %v30, %v170
  %v172 = vpop.f32.mrf.mxu0
  %173 = vdwg.mxu0
  %v174 = vmax.f32 %v131, 0.0
  %v175 = vmax.f32 %v136, 0.0
  %v176 = vmax.f32 %v141, 0.0
  %v177 = vmax.f32 %v146, 0.0
  %v178 = vmax.f32 %v151, 0.0
  %v179 = vmax.f32 %v156, 0.0
  %v180 = vmax.f32 %v161, 0.0
  %v181 = vmax.f32 %v166, 0.0
  %v182 = vmax.f32 %v171, 0.0
  %vm183 = vcmask 64512
  %184 = vst.msk [vmem:[%s3] sm:$0xff] %vm183, %v174
  %185 = vst.msk [vmem:[%s3 + $0x8] sm:$0xff] %vm183, %v175
  %186 = vst.msk [vmem:[%s3 + $0x10] sm:$0xff] %vm183, %v176
  %187 = vst.msk [vmem:[%s3 + $0x18] sm:$0xff] %vm183, %v177
  %188 = vst.msk [vmem:[%s3 + $0x20] sm:$0xff] %vm183, %v178
  %189 = vst.msk [vmem:[%s3 + $0x28] sm:$0xff] %vm183, %v179
  %190 = vst.msk [vmem:[%s3 + $0x30] sm:$0xff] %vm183, %v180
  %191 = vst.msk [vmem:[%s3 + $0x38] sm:$0xff] %vm183, %v181
  %192 = vst.msk [vmem:[%s3 + $0x40] sm:$0xff] %vm183, %v182
  // Predicated region
  $region14: #{tpu_custom_call.1} parent=0 // pred_check
    _
  $region15: #{tpu_custom_call.1} parent=0 // pred_check_branch
    %194 = sbr.rel (0) target = $region17
  $region16: #{tpu_custom_call.1} parent=0 // pred_region
    _
  $region17: #{tpu_custom_call.1} parent=0 // pred_fallthru
    _
  // Predicated region
  $region18: #{tpu_custom_call.1} parent=0 // pred_check
    _
  $region19: #{tpu_custom_call.1} parent=0 // pred_check_branch
    %196 = sbr.rel (0) target = $region21
  $region20: #{tpu_custom_call.1} parent=0 // pred_region
    _
  $region21: #{tpu_custom_call.1} parent=0 // pred_fallthru
    _

</llo_original>
